<compile_context>
chip_gen: v6e
topology: v6e:2x2x1
jax: 0.10.0
libtpu: 0.0.40
codegen_flags: <defaults>
</compile_context>

<pallas_src>
import jax
import jax.numpy as jnp
from jax.experimental import pallas as pl
from jax.experimental.pallas import tpu as pltpu

_LANE = 128                         # vreg lane width
_MAX_TILE_BYTES = 4 * 1024 * 1024   # 4 MiB row tiles (2 arrays x 2 bufs = 16 MiB live)
_VMEM_LIMIT_BYTES = 32 * 1024 * 1024  # explicit scoped-VMEM limit, safe on v5e/v6e/v7x


def _identity_copy_kernel(x_ref, o_ref):
    # Straight copy of the current VMEM tile. 1 vld + 1 vst per vreg; the
    # kernel is purely HBM-bandwidth bound.
    o_ref[...] = x_ref[...]


def _plan_layout(x: jax.Array):
    """Pick a lane-dense 2-D (rows, cols) view of x for the streaming copy."""
    n = x.size
    itemsize = jnp.dtype(x.dtype).itemsize

    # Preferred: flatten to cols that are a large multiple of 128 (unmasked,
    # lane-dense vst), keeping at least 8 rows when possible.
    if n % _LANE == 0:
        cols = None
        for c in (1024, 512, 256, 128):
            if n % c == 0 and n // c >= 8:
                cols = c
                break
        if cols is None:  # tiny input: take the widest divisor available
            for c in (1024, 512, 256, 128):
                if n % c == 0:
                    cols = c
                    break
        return n // cols, cols

    # Fallback (element count not a multiple of 128): keep the original last
    # dim as the lane axis if an (8, cols) block fits the tile budget ...
    if x.ndim >= 2:
        cols = x.shape[-1]
        if 8 * cols * itemsize <= _MAX_TILE_BYTES:
            return n // cols, cols
    # ... otherwise go fully row-major. Lane utilization is poor but this is
    # a rarely-hit correctness path that stays tiled (never whole-array VMEM).
    return n, 1


def _pick_tile_rows(rows: int, cols: int, itemsize: int) -> int:
    """Largest multiple-of-8 row tile under the VMEM budget, >=2 grid steps
    whenever the row extent allows it (so v7x can use both TensorCores)."""
    if rows <= 8:
        return rows  # single full-extent block (block == array extent is legal)
    tile = 8
    while tile * 2 <= rows and tile * 2 * cols * itemsize <= _MAX_TILE_BYTES:
        tile *= 2
    while tile > 8 and pl.cdiv(rows, tile) < 2:
        tile //= 2
    return tile


def _copy_2d(x2: jax.Array, tile_r: int, *, donate: bool) -> jax.Array:
    rows, cols = x2.shape
    itemsize = jnp.dtype(x2.dtype).itemsize
    nbytes = 2 * x2.size * itemsize
    extra = {}
    if donate:
        # Only alias when the caller actually donates x (jax.jit donate_argnums)
        # and does not reuse its handle; otherwise XLA inserts a hidden copy.
        extra["input_output_aliases"] = {0: 0}
    return pl.pallas_call(
        _identity_copy_kernel,
        out_shape=jax.ShapeDtypeStruct((rows, cols), x2.dtype),
        grid=(pl.cdiv(rows, tile_r),),   # ragged tail handled by Pallas masking
        in_specs=[pl.BlockSpec((tile_r, cols), lambda i: (i, 0))],
        out_specs=pl.BlockSpec((tile_r, cols), lambda i: (i, 0)),
        cost_estimate=pl.CostEstimate(
            flops=0, transcendentals=0, bytes_accessed=nbytes),
        compiler_params=pltpu.CompilerParams(
            dimension_semantics=("parallel",),      # shard rows across v7x's 2 TCs
            vmem_limit_bytes=_VMEM_LIMIT_BYTES),    # 16 MiB live << 32 MiB limit
        **extra,
    )(x2)


def identity_copy_pallas(x: jax.Array, *, donate: bool = False) -> jax.Array:
    """Materialized Pallas streaming copy of x (same values/shape/dtype).

    Note: for tiny inputs (< ~1 MiB) the ~0.35 us/step grid overhead plus
    launch cost dominates; prefer identity_pallas() unless a fresh buffer is
    explicitly required.
    """
    if x.size == 0:
        return x
    orig_shape = x.shape
    rows, cols = _plan_layout(x)
    itemsize = jnp.dtype(x.dtype).itemsize
    tile_r = _pick_tile_rows(rows, cols, itemsize)
    out = _copy_2d(x.reshape(rows, cols), tile_r, donate=donate)
    return out.reshape(orig_shape)


def identity_pallas(x: jax.Array) -> jax.Array:
    """nn.Identity.forward: return x unchanged.

    Zero FLOPs and zero HBM traffic — no kernel launch. Use
    identity_copy_pallas() if a materialized copy is explicitly needed.
    """
    return x


if __name__ == "__main__":
    key = jax.random.PRNGKey(0)
    # Small NCHW-shaped input consistent with the conv/LSTM pipeline.
    x = jax.random.normal(key, (2, 4, 16, 16), dtype=jnp.float32)

    # Module-faithful forward: zero-cost identity.
    y = identity_pallas(x)
    jax.block_until_ready(y)
    assert y.shape == x.shape and y.dtype == x.dtype
    assert bool(jnp.all(y == x))

    # Exercise the Pallas streaming-copy kernel on TPU as well.
    y_copy = identity_copy_pallas(x)
    jax.block_until_ready(y_copy)
    assert y_copy.shape == x.shape and y_copy.dtype == x.dtype
    assert bool(jnp.all(y_copy == x))

    print("KERNEL_OK")
</pallas_src>

<mosaic_0001>
module attributes {stable_mosaic.version = 11 : i64} {
  func.func @_identity_copy_kernel(%arg0: i32, %arg1: memref<8x256xf32, #tpu.memory_space<vmem>>, %arg2: memref<8x256xf32, #tpu.memory_space<vmem>>) attributes {dimension_semantics = [#tpu.dimension_semantics<parallel>], iteration_bounds = array<i64: 1>, scalar_prefetch = 0 : i64, scratch_operands = 0 : i64, tpu.core_type = #tpu.core_type<tc>, window_params = [{transform_indices = @transform_0, window_bounds = array<i64: 8, 256>}, {transform_indices = @transform_1, window_bounds = array<i64: 8, 256>}]} {
    %c0 = arith.constant 0 : index
    %c0_0 = arith.constant 0 : index
    %0 = vector.load %arg1[%c0, %c0_0] : memref<8x256xf32, #tpu.memory_space<vmem>>, vector<8x256xf32>
    %c0_1 = arith.constant 0 : index
    %c0_2 = arith.constant 0 : index
    %1 = vector.load %arg2[%c0_1, %c0_2] : memref<8x256xf32, #tpu.memory_space<vmem>>, vector<8x256xf32>
    tpu.vector_store %arg2[%c0_1, %c0_2], %0 {strides = array<i32>} : memref<8x256xf32, #tpu.memory_space<vmem>>, vector<8x256xf32>,
    return
  }
  func.func @transform_0(%arg0: i32) -> (i32, i32) {
    %c0_i32 = arith.constant 0 : i32
    %c0_i32_0 = arith.constant 0 : i32
    return %arg0, %c0_i32 : i32, i32
  }
  func.func @transform_1(%arg0: i32) -> (i32, i32) {
    %c0_i32 = arith.constant 0 : i32
    %c0_i32_0 = arith.constant 0 : i32
    return %arg0, %c0_i32 : i32, i32
  }
}

</mosaic_0001>

<llo_original>
// kernel: tpu_custom_call.1
$region0: #{tpu_custom_call.1}
  #allocation0 [shape = 'u32[]', space=smem, size = 0x4, offset = 0x4, fixed_abs, tag = 'smem constant byte address 0x4 - core index']
  #allocation1 [shape = 'u32[144,128]{1,0:T(1,128)}', space=vmem, size = 0x12000, scoped, tag = 'internal scratch']
  %s0 = inlined_call_operand.hbm [shape: f32[8,256], index: 0, kind: input, shape index: {}]
  %s1 = inlined_call_operand.hbm [shape: f32[8,256], index: 1, kind: output, shape index: {}]
  %s2 = sld [smem:[#allocation0]]
  $region18: #{tpu_custom_call.1} parent=0
    _
  %s4 = ssub.s32 1, %s2
  %s5 = scalar_select 0, %s4, %s2
  $region1: #{tpu_custom_call.1} parent=0
    #allocation2 [shape = 'u8[8192]{0}', space=vmem, size = 0x2000, scoped, tag = 'input window, operand 0, single buffered']
    #allocation3 [shape = 's32[1]{0}', space=sflag, size = 0x4, scoped, tag = 'scoped memory for tpu_custom_call.1']
    #allocation4 [shape = 's32[1]{0}', space=sflag, size = 0x4, scoped, tag = 'scoped memory for tpu_custom_call.1']
    #allocation5 [shape = 'u8[8192]{0}', space=vmem, size = 0x2000, scoped, tag = 'output window, operand 0, single buffered']
    %6 = vsyncpa [#allocation3], 0
    %7 = vsyncpa [#allocation4], 0
    // Predicated region
    $region2: #{tpu_custom_call.1} parent=1 // pred_check
      _
    $region3: #{tpu_custom_call.1} parent=1 // pred_check_branch
      %9 = sbr.rel (0) target = $region5
    $region4: #{tpu_custom_call.1} parent=1 // pred_region
      %s11 = ssub.s32 256, 256
      %12 = vsyncadd [#allocation3], %s11
      %s14 = sshll.u32 [#allocation2], 4
      %s15 = int_to_ptr.vmem [resolvable:$true] %s14
      %17 = dma.hbm_to_vmem [thread:$0]  %s0, 256, %s15, [#allocation3]
    $region5: #{tpu_custom_call.1} parent=1 // pred_fallthru
      _
    // Predicated region
    $region6: #{tpu_custom_call.1} parent=1 // pred_check
      _
    $region7: #{tpu_custom_call.1} parent=1 // pred_check_branch
      %19 = sbr.rel (0) target = $region9
    $region8: #{tpu_custom_call.1} parent=1 // pred_region
      %20 = dma.done [#allocation3], 256
    $region9: #{tpu_custom_call.1} parent=1 // pred_fallthru
      _
    %v21 = vld [vmem:[#allocation2] sm:$0xff]
    %v22 = vld [vmem:[#allocation2 + $0x8] sm:$0xff]
    %23 = vst [vmem:[#allocation5] sm:$0xff] %v21
    %24 = vst [vmem:[#allocation5 + $0x8] sm:$0xff] %v22
    // Predicated region
    $region10: #{tpu_custom_call.1} parent=1 // pred_check
      _
    $region11: #{tpu_custom_call.1} parent=1 // pred_check_branch
      %26 = sbr.rel (0) target = $region13
    $region12: #{tpu_custom_call.1} parent=1 // pred_region
      %s28 = ssub.s32 256, 256
      %29 = vsyncadd [#allocation4], %s28
      %s31 = sshll.u32 [#allocation5], 4
      %s32 = int_to_ptr.vmem [resolvable:$true] %s31
      %34 = dma.vmem_to_hbm [thread:$0]  %s32, 256, %s1, [#allocation4]
    $region13: #{tpu_custom_call.1} parent=1 // pred_fallthru
      _
    // Predicated region
    $region14: #{tpu_custom_call.1} parent=1 // pred_check
      _
    $region15: #{tpu_custom_call.1} parent=1 // pred_check_branch
      %36 = sbr.rel (0) target = $region17
    $region16: #{tpu_custom_call.1} parent=1 // pred_region
      %37 = dma.done [#allocation4], 256
    $region17: #{tpu_custom_call.1} parent=1 // pred_fallthru
      _
    %38 = vsyncpa [#allocation3], 1
    %39 = vsyncpa [#allocation4], 1

</llo_original>
